<compile_context>
chip_gen: v5e
topology: v5e:2x2
jax: 0.10.0
libtpu: 0.0.40
codegen_flags: <defaults>
</compile_context>

<pallas_src>
import functools

import jax
import jax.numpy as jnp
from jax.experimental import pallas as pl
from jax.experimental.pallas import tpu as pltpu


def _round_up(x: int, m: int) -> int:
    return ((x + m - 1) // m) * m


def _fused_head_kernel(xt_ref, xi_ref, wt_ref, wi_ref, b_ref, o_ref):
    # out = [text_cls | image_cls] @ W + b, with the concat fused:
    #   out = x_t @ W_t + x_i @ W_i + b   (bf16 operands, f32 MXU accumulation)
    acc = jnp.dot(xt_ref[...], wt_ref[...], preferred_element_type=jnp.float32)
    acc = acc + jnp.dot(xi_ref[...], wi_ref[...], preferred_element_type=jnp.float32)
    # bias broadcast over sublanes, added once per batch tile in the epilogue.
    o_ref[...] = (acc + b_ref[...]).astype(o_ref.dtype)


@functools.partial(jax.jit, static_argnames=("block_b",))
def multimodal_head(text_feat, image_feat, fc_weight, fc_bias, *, block_b=512):
    """fc(concat([text_feat, image_feat], -1)) as a single fused Pallas kernel.

    Args:
      text_feat:  [B, Dt] CLS features from the text backbone.
      image_feat: [B, Di] CLS features from the image backbone.
      fc_weight:  [C, Dt + Di]  -- PyTorch nn.Linear layout (out_features, in_features).
      fc_bias:    [C]
    Returns:
      [B, C] float32 logits.
    """
    B, Dt = text_feat.shape
    Bi, Di = image_feat.shape
    assert B == Bi, "batch mismatch between modalities"
    C = fc_bias.shape[0]
    assert fc_weight.shape == (C, Dt + Di)

    # Split the PyTorch-layout weight and transpose once (tiny, one-off) so the
    # kernel computes x @ W in MXU-native [K, N] layout.
    w_t = fc_weight[:, :Dt].T  # [Dt, C]
    w_i = fc_weight[:, Dt:].T  # [Di, C]

    # Lane-dense / MXU-friendly padding.
    C_pad = _round_up(max(C, 128), 128)
    Dt_pad = _round_up(Dt, 128)
    Di_pad = _round_up(Di, 128)

    # Batch tile: multiple of 16 (bf16 sublane packing); at most block_b rows.
    TB = min(block_b, _round_up(B, 16))
    B_pad = _round_up(B, TB)

    def pad2(a, rows, cols):
        return jnp.pad(a, ((0, rows - a.shape[0]), (0, cols - a.shape[1])))

    xt = pad2(text_feat, B_pad, Dt_pad).astype(jnp.bfloat16)
    xi = pad2(image_feat, B_pad, Di_pad).astype(jnp.bfloat16)
    wt = pad2(w_t, Dt_pad, C_pad).astype(jnp.bfloat16)
    wi = pad2(w_i, Di_pad, C_pad).astype(jnp.bfloat16)
    bias = jnp.pad(fc_bias, (0, C_pad - C)).astype(jnp.float32)[None, :]  # [1, C_pad]

    grid = (B_pad // TB,)
    cost = pl.CostEstimate(
        flops=2 * B_pad * (Dt_pad + Di_pad) * C_pad,
        transcendentals=0,
        bytes_accessed=(xt.size + xi.size + wt.size + wi.size) * 2
        + bias.size * 4 + B_pad * C_pad * 4,
    )

    out = pl.pallas_call(
        _fused_head_kernel,
        out_shape=jax.ShapeDtypeStruct((B_pad, C_pad), jnp.float32),
        grid=grid,
        in_specs=[
            pl.BlockSpec((TB, Dt_pad), lambda i: (i, 0)),       # text CLS tile
            pl.BlockSpec((TB, Di_pad), lambda i: (i, 0)),       # image CLS tile
            pl.BlockSpec((Dt_pad, C_pad), lambda i: (0, 0)),    # W_t: VMEM-resident
            pl.BlockSpec((Di_pad, C_pad), lambda i: (0, 0)),    # W_i: VMEM-resident
            pl.BlockSpec((1, C_pad), lambda i: (0, 0)),         # bias: VMEM-resident
        ],
        out_specs=pl.BlockSpec((TB, C_pad), lambda i: (i, 0)),
        compiler_params=pltpu.CompilerParams(
            dimension_semantics=("parallel",)),
        cost_estimate=cost,
    )(xt, xi, wt, wi, bias)

    return out[:B, :C]


def multimodal_classifier_forward(text_last_hidden, image_last_hidden,
                                  fc_weight, fc_bias):
    """Forward pass of MultimodalClassifier given the backbone outputs.

    text_last_hidden:  [B, S_text, Dt]  (BertModel(...).last_hidden_state)
    image_last_hidden: [B, S_img,  Di]  (ViTModel(...).last_hidden_state)
    """
    # CLS extraction is a trivial strided slice -> done in the JAX wrapper, not the
    # kernel (avoids hauling the full sequence axis into VMEM).
    text_feat = text_last_hidden[:, 0, :]
    image_feat = image_last_hidden[:, 0, :]
    return multimodal_head(text_feat, image_feat, fc_weight, fc_bias)


if __name__ == "__main__":
    # Small shapes consistent with the module (stand-ins for the 768-d backbones).
    B, S_text, S_img = 8, 8, 6
    text_dim, image_dim, num_classes = 256, 256, 5

    key = jax.random.PRNGKey(0)
    k1, k2, k3, k4 = jax.random.split(key, 4)
    text_last_hidden = jax.random.normal(k1, (B, S_text, text_dim), jnp.float32)
    image_last_hidden = jax.random.normal(k2, (B, S_img, image_dim), jnp.float32)
    fc_weight = jax.random.normal(k3, (num_classes, text_dim + image_dim),
                                  jnp.float32) * 0.02
    fc_bias = jax.random.normal(k4, (num_classes,), jnp.float32) * 0.02

    out = multimodal_classifier_forward(text_last_hidden, image_last_hidden,
                                        fc_weight, fc_bias)
    out = jax.block_until_ready(out)

    # Pure-JAX reference with matching bf16 operand rounding / f32 accumulation.
    tf = text_last_hidden[:, 0, :].astype(jnp.bfloat16).astype(jnp.float32)
    imf = image_last_hidden[:, 0, :].astype(jnp.bfloat16).astype(jnp.float32)
    w_ref = fc_weight.astype(jnp.bfloat16).astype(jnp.float32)
    ref = jnp.concatenate([tf, imf], axis=1) @ w_ref.T + fc_bias

    assert out.shape == (B, num_classes), out.shape
    assert jnp.allclose(out, ref, rtol=2e-2, atol=2e-2), (
        "max abs err:", float(jnp.max(jnp.abs(out - ref))))
    print("KERNEL_OK")
</pallas_src>

<mosaic_0001>
module attributes {stable_mosaic.version = 11 : i64} {
  func.func @_fused_head_kernel(%arg0: i32, %arg1: memref<16x256xbf16, #tpu.memory_space<vmem>>, %arg2: memref<16x256xbf16, #tpu.memory_space<vmem>>, %arg3: memref<256x128xbf16, #tpu.memory_space<vmem>>, %arg4: memref<256x128xbf16, #tpu.memory_space<vmem>>, %arg5: memref<1x128xf32, #tpu.memory_space<vmem>>, %arg6: memref<16x128xf32, #tpu.memory_space<vmem>>) attributes {dimension_semantics = [#tpu.dimension_semantics<parallel>], iteration_bounds = array<i64: 1>, scalar_prefetch = 0 : i64, scratch_operands = 0 : i64, tpu.core_type = #tpu.core_type<tc>, window_params = [{transform_indices = @transform_0, window_bounds = array<i64: 16, 256>}, {transform_indices = @transform_1, window_bounds = array<i64: 16, 256>}, {pipeline_mode = #tpu.pipeline_mode<synchronous>, transform_indices = @transform_2, window_bounds = array<i64: 256, 128>}, {pipeline_mode = #tpu.pipeline_mode<synchronous>, transform_indices = @transform_3, window_bounds = array<i64: 256, 128>}, {pipeline_mode = #tpu.pipeline_mode<synchronous>, transform_indices = @transform_4, window_bounds = array<i64: 1, 128>}, {transform_indices = @transform_5, window_bounds = array<i64: 16, 128>}]} {
    %c0 = arith.constant 0 : index
    %c0_0 = arith.constant 0 : index
    %0 = vector.load %arg1[%c0, %c0_0] : memref<16x256xbf16, #tpu.memory_space<vmem>>, vector<16x256xbf16>
    %c0_1 = arith.constant 0 : index
    %c0_2 = arith.constant 0 : index
    %1 = vector.load %arg3[%c0_1, %c0_2] : memref<256x128xbf16, #tpu.memory_space<vmem>>, vector<256x128xbf16>
    %cst = arith.constant dense<0.000000e+00> : vector<16x128xf32>
    %2 = tpu.matmul %0, %1, %cst {dimension_numbers = #tpu.dot_dimension_numbers<[1], [0], [0], [1], [0, 0, 1, 1], [], []>} : vector<16x256xbf16>, vector<256x128xbf16>, vector<16x128xf32> -> vector<16x128xf32>
    %c0_3 = arith.constant 0 : index
    %c0_4 = arith.constant 0 : index
    %3 = vector.load %arg2[%c0_3, %c0_4] : memref<16x256xbf16, #tpu.memory_space<vmem>>, vector<16x256xbf16>
    %c0_5 = arith.constant 0 : index
    %c0_6 = arith.constant 0 : index
    %4 = vector.load %arg4[%c0_5, %c0_6] : memref<256x128xbf16, #tpu.memory_space<vmem>>, vector<256x128xbf16>
    %cst_7 = arith.constant dense<0.000000e+00> : vector<16x128xf32>
    %5 = tpu.matmul %3, %4, %cst_7 {dimension_numbers = #tpu.dot_dimension_numbers<[1], [0], [0], [1], [0, 0, 1, 1], [], []>} : vector<16x256xbf16>, vector<256x128xbf16>, vector<16x128xf32> -> vector<16x128xf32>
    %6 = arith.addf %2, %5 : vector<16x128xf32>
    %c0_8 = arith.constant 0 : index
    %c0_9 = arith.constant 0 : index
    %7 = vector.load %arg5[%c0_8, %c0_9] : memref<1x128xf32, #tpu.memory_space<vmem>>, vector<1x128xf32>
    %8 = vector.broadcast %7 : vector<1x128xf32> to vector<16x128xf32>
    %9 = arith.addf %6, %8 : vector<16x128xf32>
    %c0_10 = arith.constant 0 : index
    %c0_11 = arith.constant 0 : index
    %10 = vector.load %arg6[%c0_10, %c0_11] : memref<16x128xf32, #tpu.memory_space<vmem>>, vector<16x128xf32>
    tpu.vector_store %arg6[%c0_10, %c0_11], %9 {strides = array<i32>} : memref<16x128xf32, #tpu.memory_space<vmem>>, vector<16x128xf32>,
    return
  }
  func.func @transform_0(%arg0: i32) -> (i32, i32) {
    %c0_i32 = arith.constant 0 : i32
    %c0_i32_0 = arith.constant 0 : i32
    return %arg0, %c0_i32 : i32, i32
  }
  func.func @transform_1(%arg0: i32) -> (i32, i32) {
    %c0_i32 = arith.constant 0 : i32
    %c0_i32_0 = arith.constant 0 : i32
    return %arg0, %c0_i32 : i32, i32
  }
  func.func @transform_2(%arg0: i32) -> (i32, i32) {
    %c0_i32 = arith.constant 0 : i32
    %c0_i32_0 = arith.constant 0 : i32
    %c0_i32_1 = arith.constant 0 : i32
    return %c0_i32, %c0_i32_0 : i32, i32
  }
  func.func @transform_3(%arg0: i32) -> (i32, i32) {
    %c0_i32 = arith.constant 0 : i32
    %c0_i32_0 = arith.constant 0 : i32
    %c0_i32_1 = arith.constant 0 : i32
    return %c0_i32, %c0_i32_0 : i32, i32
  }
  func.func @transform_4(%arg0: i32) -> (i32, i32) {
    %c0_i32 = arith.constant 0 : i32
    %c0_i32_0 = arith.constant 0 : i32
    %c0_i32_1 = arith.constant 0 : i32
    return %c0_i32, %c0_i32_0 : i32, i32
  }
  func.func @transform_5(%arg0: i32) -> (i32, i32) {
    %c0_i32 = arith.constant 0 : i32
    %c0_i32_0 = arith.constant 0 : i32
    return %arg0, %c0_i32 : i32, i32
  }
}

</mosaic_0001>

<llo_original>
// kernel: multimodal_head.1
$region0: #{multimodal_head.1}
  #allocation0 [shape = 'u32[]', space=smem, size = 0x4, offset = 0x4, fixed_abs, tag = 'smem constant byte address 0x4 - core index']
  #allocation1 [shape = 'u32[72,128]{1,0:T(1,128)}', space=vmem, size = 0x9000, scoped, tag = 'internal scratch']
  %s0 = inlined_call_operand.vmem [shape: bf16[16,256], index: 0, kind: input, shape index: {}]
  %s1 = inlined_call_operand.vmem [shape: bf16[16,256], index: 1, kind: input, shape index: {}]
  %s2 = inlined_call_operand.vmem [shape: bf16[256,128], index: 2, kind: input, shape index: {}]
  %s3 = inlined_call_operand.vmem [shape: bf16[256,128], index: 3, kind: input, shape index: {}]
  %s4 = inlined_call_operand.vmem [shape: f32[1,128], index: 4, kind: input, shape index: {}]
  %s5 = inlined_call_operand.vmem [shape: f32[16,128], index: 5, kind: output, shape index: {}]
  %s6 = sld [smem:[#allocation0]]
  $region30: #{multimodal_head.1} parent=0
    _
  %s8 = ssub.s32 1, %s6
  %s9 = scalar_select 0, %s8, %s6
  // Predicated region
  $region2: #{multimodal_head.1} parent=0 // pred_check
    _
  $region3: #{multimodal_head.1} parent=0 // pred_check_branch
    %11 = sbr.rel (0) target = $region5
  $region4: #{multimodal_head.1} parent=0 // pred_region
    _
  $region5: #{multimodal_head.1} parent=0 // pred_fallthru
    _
  // Predicated region
  $region6: #{multimodal_head.1} parent=0 // pred_check
    _
  $region7: #{multimodal_head.1} parent=0 // pred_check_branch
    %13 = sbr.rel (0) target = $region9
  $region8: #{multimodal_head.1} parent=0 // pred_region
    _
  $region9: #{multimodal_head.1} parent=0 // pred_fallthru
    _
  // Predicated region
  $region10: #{multimodal_head.1} parent=0 // pred_check
    _
  $region11: #{multimodal_head.1} parent=0 // pred_check_branch
    %15 = sbr.rel (0) target = $region13
  $region12: #{multimodal_head.1} parent=0 // pred_region
    _
  $region13: #{multimodal_head.1} parent=0 // pred_fallthru
    _
  // Predicated region
  $region14: #{multimodal_head.1} parent=0 // pred_check
    _
  $region15: #{multimodal_head.1} parent=0 // pred_check_branch
    %17 = sbr.rel (0) target = $region17
  $region16: #{multimodal_head.1} parent=0 // pred_region
    _
  $region17: #{multimodal_head.1} parent=0 // pred_fallthru
    _
  // Predicated region
  $region18: #{multimodal_head.1} parent=0 // pred_check
    _
  $region19: #{multimodal_head.1} parent=0 // pred_check_branch
    %19 = sbr.rel (0) target = $region21
  $region20: #{multimodal_head.1} parent=0 // pred_region
    _
  $region21: #{multimodal_head.1} parent=0 // pred_fallthru
    _
  %v20 = vld [vmem:[%s0] sm:$0xff]
  %v21 = vld [vmem:[%s0 + $0x8] sm:$0xff]
  %v22 = vld [vmem:[%s2] sm:$0xf]
  %v23 = vld [vmem:[%s2 + $0x4] sm:$0xf]
  %v24 = vld [vmem:[%s2 + $0x8] sm:$0xf]
  %v25 = vld [vmem:[%s2 + $0xc] sm:$0xf]
  %v26 = vld [vmem:[%s2 + $0x10] sm:$0xf]
  %v27 = vld [vmem:[%s2 + $0x14] sm:$0xf]
  %v28 = vld [vmem:[%s2 + $0x18] sm:$0xf]
  %v29 = vld [vmem:[%s2 + $0x1c] sm:$0xf]
  %v30 = vld [vmem:[%s2 + $0x20] sm:$0xf]
  %v31 = vld [vmem:[%s2 + $0x24] sm:$0xf]
  %v32 = vld [vmem:[%s2 + $0x28] sm:$0xf]
  %v33 = vld [vmem:[%s2 + $0x2c] sm:$0xf]
  %v34 = vld [vmem:[%s2 + $0x30] sm:$0xf]
  %v35 = vld [vmem:[%s2 + $0x34] sm:$0xf]
  %v36 = vld [vmem:[%s2 + $0x38] sm:$0xf]
  %v37 = vld [vmem:[%s2 + $0x3c] sm:$0xf]
  %v38 = vld [vmem:[%s2 + $0x40] sm:$0xf]
  %v39 = vld [vmem:[%s2 + $0x44] sm:$0xf]
  %v40 = vld [vmem:[%s2 + $0x48] sm:$0xf]
  %v41 = vld [vmem:[%s2 + $0x4c] sm:$0xf]
  %v42 = vld [vmem:[%s2 + $0x50] sm:$0xf]
  %v43 = vld [vmem:[%s2 + $0x54] sm:$0xf]
  %v44 = vld [vmem:[%s2 + $0x58] sm:$0xf]
  %v45 = vld [vmem:[%s2 + $0x5c] sm:$0xf]
  %v46 = vld [vmem:[%s2 + $0x60] sm:$0xf]
  %v47 = vld [vmem:[%s2 + $0x64] sm:$0xf]
  %v48 = vld [vmem:[%s2 + $0x68] sm:$0xf]
  %v49 = vld [vmem:[%s2 + $0x6c] sm:$0xf]
  %v50 = vld [vmem:[%s2 + $0x70] sm:$0xf]
  %v51 = vld [vmem:[%s2 + $0x74] sm:$0xf]
  %v52 = vld [vmem:[%s2 + $0x78] sm:$0xf]
  %v53 = vld [vmem:[%s2 + $0x7c] sm:$0xf]
  %v54 = vld [vmem:[%s1] sm:$0xff]
  %v55 = vld [vmem:[%s1 + $0x8] sm:$0xff]
  %v56 = vld [vmem:[%s3] sm:$0xf]
  %v57 = vld [vmem:[%s3 + $0x4] sm:$0xf]
  %v58 = vld [vmem:[%s3 + $0x8] sm:$0xf]
  %v59 = vld [vmem:[%s3 + $0xc] sm:$0xf]
  %v60 = vld [vmem:[%s3 + $0x10] sm:$0xf]
  %v61 = vld [vmem:[%s3 + $0x14] sm:$0xf]
  %v62 = vld [vmem:[%s3 + $0x18] sm:$0xf]
  %v63 = vld [vmem:[%s3 + $0x1c] sm:$0xf]
  %v64 = vld [vmem:[%s3 + $0x20] sm:$0xf]
  %v65 = vld [vmem:[%s3 + $0x24] sm:$0xf]
  %v66 = vld [vmem:[%s3 + $0x28] sm:$0xf]
  %v67 = vld [vmem:[%s3 + $0x2c] sm:$0xf]
  %v68 = vld [vmem:[%s3 + $0x30] sm:$0xf]
  %v69 = vld [vmem:[%s3 + $0x34] sm:$0xf]
  %v70 = vld [vmem:[%s3 + $0x38] sm:$0xf]
  %v71 = vld [vmem:[%s3 + $0x3c] sm:$0xf]
  %v72 = vld [vmem:[%s3 + $0x40] sm:$0xf]
  %v73 = vld [vmem:[%s3 + $0x44] sm:$0xf]
  %v74 = vld [vmem:[%s3 + $0x48] sm:$0xf]
  %v75 = vld [vmem:[%s3 + $0x4c] sm:$0xf]
  %v76 = vld [vmem:[%s3 + $0x50] sm:$0xf]
  %v77 = vld [vmem:[%s3 + $0x54] sm:$0xf]
  %v78 = vld [vmem:[%s3 + $0x58] sm:$0xf]
  %v79 = vld [vmem:[%s3 + $0x5c] sm:$0xf]
  %v80 = vld [vmem:[%s3 + $0x60] sm:$0xf]
  %v81 = vld [vmem:[%s3 + $0x64] sm:$0xf]
  %v82 = vld [vmem:[%s3 + $0x68] sm:$0xf]
  %v83 = vld [vmem:[%s3 + $0x6c] sm:$0xf]
  %v84 = vld [vmem:[%s3 + $0x70] sm:$0xf]
  %v85 = vld [vmem:[%s3 + $0x74] sm:$0xf]
  %v86 = vld [vmem:[%s3 + $0x78] sm:$0xf]
  %v87 = vld [vmem:[%s3 + $0x7c] sm:$0xf]
  %v90 = vunpack.c.l.b16 %v54
  %v91 = vunpack.c.h.b16 %v54
  %v92 = vunpack.c.l.b16 %v55
  %v93 = vunpack.c.h.b16 %v55
  %v94 = vpack.c.b16 %v92, %v90
  %v95 = vpack.c.b16 %v93, %v91
  %v130 = vunpack.c.l.b16 %v56
  %v131 = vunpack.c.l.b16 %v57
  %v132 = vunpack.c.l.b16 %v58
  %v133 = vunpack.c.l.b16 %v59
  %v134 = vunpack.c.l.b16 %v60
  %v135 = vunpack.c.l.b16 %v61
  %v136 = vunpack.c.l.b16 %v62
  %v137 = vunpack.c.l.b16 %v63
  %v138 = vunpack.c.l.b16 %v64
  %v139 = vunpack.c.l.b16 %v65
  %v140 = vunpack.c.l.b16 %v66
  %v141 = vunpack.c.l.b16 %v67
  %v142 = vunpack.c.l.b16 %v68
  %v143 = vunpack.c.l.b16 %v69
  %v144 = vunpack.c.l.b16 %v70
  %v145 = vunpack.c.l.b16 %v71
  %v146 = vunpack.c.l.b16 %v72
  %v147 = vunpack.c.l.b16 %v73
  %v148 = vunpack.c.l.b16 %v74
  %v149 = vunpack.c.l.b16 %v75
  %v150 = vunpack.c.l.b16 %v76
  %v151 = vunpack.c.l.b16 %v77
  %v152 = vunpack.c.l.b16 %v78
  %v153 = vunpack.c.l.b16 %v79
  %v154 = vunpack.c.l.b16 %v80
  %v155 = vunpack.c.l.b16 %v81
  %v156 = vunpack.c.l.b16 %v82
  %v157 = vunpack.c.l.b16 %v83
  %v158 = vunpack.c.l.b16 %v84
  %v159 = vunpack.c.l.b16 %v85
  %v160 = vunpack.c.l.b16 %v86
  %v161 = vunpack.c.l.b16 %v87
  %v162 = vpack.c.b16 %v131, %v130
  %v163 = vpack.c.b16 %v133, %v132
  %v164 = vpack.c.b16 %v135, %v134
  %v165 = vpack.c.b16 %v137, %v136
  %v166 = vpack.c.b16 %v139, %v138
  %v167 = vpack.c.b16 %v141, %v140
  %v168 = vpack.c.b16 %v143, %v142
  %v169 = vpack.c.b16 %v145, %v144
  %v170 = vpack.c.b16 %v147, %v146
  %v171 = vpack.c.b16 %v149, %v148
  %v172 = vpack.c.b16 %v151, %v150
  %v173 = vpack.c.b16 %v153, %v152
  %v174 = vpack.c.b16 %v155, %v154
  %v175 = vpack.c.b16 %v157, %v156
  %v176 = vpack.c.b16 %v159, %v158
  %v177 = vpack.c.b16 %v161, %v160
  %194 = vmatpush.bf16.msra.mxu0 %v169
  %195 = vmatpush.bf16.msra.mxu0 %v168
  %196 = vmatpush.bf16.msra.mxu0 %v167
  %197 = vmatpush.bf16.msra.mxu0 %v166
  %198 = vmatpush.bf16.msra.mxu0 %v165
  %199 = vmatpush.bf16.msra.mxu0 %v164
  %200 = vmatpush.bf16.msra.mxu0 %v163
  %201 = vmatpush.bf16.msra.mxu0 %v162
  %202 = vmatmul.bf16.gmra.mxu0 %v94
  %v203 = vpop.f32.mrf.mxu0
  %v204 = vadd.f32 0.0, %v203
  %v205 = vpop.f32.mrf.mxu0
  %v206 = vadd.f32 0.0, %v205
  %207 = vdwg.mxu0
  %208 = vmatpush.bf16.msra.mxu0 %v177
  %209 = vmatpush.bf16.msra.mxu0 %v176
  %210 = vmatpush.bf16.msra.mxu0 %v175
  %211 = vmatpush.bf16.msra.mxu0 %v174
  %212 = vmatpush.bf16.msra.mxu0 %v173
  %213 = vmatpush.bf16.msra.mxu0 %v172
  %214 = vmatpush.bf16.msra.mxu0 %v171
  %215 = vmatpush.bf16.msra.mxu0 %v170
  %216 = vmatmul.bf16.gmra.mxu0 %v95
  %v217 = vpop.f32.mrf.mxu0
  %v218 = vadd.f32 %v204, %v217
  %v219 = vpop.f32.mrf.mxu0
  %v220 = vadd.f32 %v206, %v219
  %221 = vdwg.mxu0
  %v224 = vunpack.c.l.b16 %v20
  %v225 = vunpack.c.h.b16 %v20
  %v226 = vunpack.c.l.b16 %v21
  %v227 = vunpack.c.h.b16 %v21
  %v228 = vpack.c.b16 %v226, %v224
  %v229 = vpack.c.b16 %v227, %v225
  %v264 = vunpack.c.l.b16 %v22
  %v265 = vunpack.c.l.b16 %v23
  %v266 = vunpack.c.l.b16 %v24
  %v267 = vunpack.c.l.b16 %v25
  %v268 = vunpack.c.l.b16 %v26
  %v269 = vunpack.c.l.b16 %v27
  %v270 = vunpack.c.l.b16 %v28
  %v271 = vunpack.c.l.b16 %v29
  %v272 = vunpack.c.l.b16 %v30
  %v273 = vunpack.c.l.b16 %v31
  %v274 = vunpack.c.l.b16 %v32
  %v275 = vunpack.c.l.b16 %v33
  %v276 = vunpack.c.l.b16 %v34
  %v277 = vunpack.c.l.b16 %v35
  %v278 = vunpack.c.l.b16 %v36
  %v279 = vunpack.c.l.b16 %v37
  %v280 = vunpack.c.l.b16 %v38
  %v281 = vunpack.c.l.b16 %v39
  %v282 = vunpack.c.l.b16 %v40
  %v283 = vunpack.c.l.b16 %v41
  %v284 = vunpack.c.l.b16 %v42
  %v285 = vunpack.c.l.b16 %v43
  %v286 = vunpack.c.l.b16 %v44
  %v287 = vunpack.c.l.b16 %v45
  %v288 = vunpack.c.l.b16 %v46
  %v289 = vunpack.c.l.b16 %v47
  %v290 = vunpack.c.l.b16 %v48
  %v291 = vunpack.c.l.b16 %v49
  %v292 = vunpack.c.l.b16 %v50
  %v293 = vunpack.c.l.b16 %v51
  %v294 = vunpack.c.l.b16 %v52
  %v295 = vunpack.c.l.b16 %v53
  %v296 = vpack.c.b16 %v265, %v264
  %v297 = vpack.c.b16 %v267, %v266
  %v298 = vpack.c.b16 %v269, %v268
  %v299 = vpack.c.b16 %v271, %v270
  %v300 = vpack.c.b16 %v273, %v272
  %v301 = vpack.c.b16 %v275, %v274
  %v302 = vpack.c.b16 %v277, %v276
  %v303 = vpack.c.b16 %v279, %v278
  %v304 = vpack.c.b16 %v281, %v280
  %v305 = vpack.c.b16 %v283, %v282
  %v306 = vpack.c.b16 %v285, %v284
  %v307 = vpack.c.b16 %v287, %v286
  %v308 = vpack.c.b16 %v289, %v288
  %v309 = vpack.c.b16 %v291, %v290
  %v310 = vpack.c.b16 %v293, %v292
  %v311 = vpack.c.b16 %v295, %v294
  %328 = vmatpush.bf16.msra.mxu0 %v303
  %329 = vmatpush.bf16.msra.mxu0 %v302
  %330 = vmatpush.bf16.msra.mxu0 %v301
  %331 = vmatpush.bf16.msra.mxu0 %v300
  %332 = vmatpush.bf16.msra.mxu0 %v299
  %333 = vmatpush.bf16.msra.mxu0 %v298
  %334 = vmatpush.bf16.msra.mxu0 %v297
  %335 = vmatpush.bf16.msra.mxu0 %v296
  %336 = vmatmul.bf16.gmra.mxu0 %v228
  %v337 = vpop.f32.mrf.mxu0
  %v338 = vadd.f32 %v218, %v337
  %v339 = vpop.f32.mrf.mxu0
  %v340 = vadd.f32 %v220, %v339
  %341 = vdwg.mxu0
  %342 = vmatpush.bf16.msra.mxu0 %v311
  %343 = vmatpush.bf16.msra.mxu0 %v310
  %344 = vmatpush.bf16.msra.mxu0 %v309
  %345 = vmatpush.bf16.msra.mxu0 %v308
  %346 = vmatpush.bf16.msra.mxu0 %v307
  %347 = vmatpush.bf16.msra.mxu0 %v306
  %348 = vmatpush.bf16.msra.mxu0 %v305
  %349 = vmatpush.bf16.msra.mxu0 %v304
  %350 = vmatmul.bf16.gmra.mxu0 %v229
  %v351 = vpop.f32.mrf.mxu0
  %v352 = vadd.f32 %v338, %v351
  %v353 = vpop.f32.mrf.mxu0
  %v354 = vadd.f32 %v340, %v353
  %355 = vdwg.mxu0
  %v356 = vld [vmem:[%s4] sm:$0x1]
  %v358 = vperm.slane %v356, 0
  %v360 = vadd.f32 %v352, %v358
  %v361 = vadd.f32 %v354, %v358
  %362 = vst [vmem:[%s5] sm:$0xff] %v360
  %363 = vst [vmem:[%s5 + $0x8] sm:$0xff] %v361
  // Predicated region
  $region22: #{multimodal_head.1} parent=0 // pred_check
    _
  $region23: #{multimodal_head.1} parent=0 // pred_check_branch
    %365 = sbr.rel (0) target = $region25
  $region24: #{multimodal_head.1} parent=0 // pred_region
    _
  $region25: #{multimodal_head.1} parent=0 // pred_fallthru
    _
  // Predicated region
  $region26: #{multimodal_head.1} parent=0 // pred_check
    _
  $region27: #{multimodal_head.1} parent=0 // pred_check_branch
    %367 = sbr.rel (0) target = $region29
  $region28: #{multimodal_head.1} parent=0 // pred_region
    _
  $region29: #{multimodal_head.1} parent=0 // pred_fallthru
    _

</llo_original>
